<compile_context>
chip_gen: v6e
topology: v6e:2x2x1
jax: 0.10.0
libtpu: 0.0.40
codegen_flags: <defaults>
</compile_context>

<pallas_src>
import functools

import jax
import jax.numpy as jnp
from jax import lax
from jax.experimental import pallas as pl
from jax.experimental.pallas import tpu as pltpu


# ----------------------------------------------------------------------------
# Pallas kernel: one wide matmul per grid step (grid = lane blocks only).
#   x_ref : (K_pad, L_blk)  bf16   im2col'd input columns (batch folded in)
#   w_ref : (Cout, K_pad)   bf16   flipped weights, taps collapsed into K
#   b_ref : (Cout, 1)       f32    bias
#   o_ref : (Cout, L_blk)   f32    lane-dense output block
# ----------------------------------------------------------------------------
def _convt_matmul_kernel(x_ref, w_ref, b_ref, o_ref):
    o_ref[...] = (
        jnp.dot(w_ref[...], x_ref[...], preferred_element_type=jnp.float32)
        + b_ref[...]
    )


def _add_coords(x):
    """AddCoords(radius_channel=False): append xx and yy channels (NCHW).

    Reproduces the PyTorch reference exactly (which requires H == W):
      xx_channel[n,0,i,j] = j/(H-1)*2 - 1
      yy_channel[n,0,i,j] = i/(W-1)*2 - 1
    """
    n, _, h, w = x.shape
    assert h == w, "reference AddCoords implementation requires square inputs"
    xx = (jnp.arange(h, dtype=jnp.float32) / (h - 1)) * 2.0 - 1.0  # along W axis
    yy = (jnp.arange(w, dtype=jnp.float32) / (w - 1)) * 2.0 - 1.0  # along H axis
    xx_ch = jnp.broadcast_to(xx[None, None, None, :], (n, 1, h, w))
    yy_ch = jnp.broadcast_to(yy[None, None, :, None], (n, 1, h, w))
    return jnp.concatenate([x.astype(jnp.float32), xx_ch, yy_ch], axis=1)


def _num_lane_blocks(total_lanes):
    """2-way lane split on v7x (2 TensorCores per chip); single step otherwise."""
    try:
        kind = jax.devices()[0].device_kind.lower()
    except Exception:
        kind = ""
    n = 2 if "v7" in kind else 1
    if n > 1 and total_lanes % (n * 128) != 0:
        n = 1
    return n


@functools.partial(jax.jit, static_argnames=("stride", "padding", "output_padding"))
def coord_conv_transpose(x, weight, bias, *, stride, padding, output_padding):
    """Forward pass of CoordConvTranspose.

    x      : (N, Cin, H, W)            float32, NCHW
    weight : (Cin+2, Cout, kH, kW)     PyTorch ConvTranspose2d weight layout
    bias   : (Cout,)
    returns: (N, Cout, OH, OW) with OH = (H-1)*s - 2p + kH + op
    """
    s, p, op = stride, padding, output_padding

    # ---- AddCoords (glue), cast to bf16 early to halve wrapper HBM traffic --
    x_aug = _add_coords(x).astype(jnp.bfloat16)            # (N, C, H, W)
    n, c, h, w = x_aug.shape
    c_in_w, c_out, kh, kw = weight.shape
    assert c_in_w == c
    assert op < s and kh - 1 - p >= 0 and kw - 1 - p >= 0

    oh = (h - 1) * s - 2 * p + kh + op
    ow = (w - 1) * s - 2 * p + kw + op
    hd, wd = (h - 1) * s + 1, (w - 1) * s + 1

    # ---- rewrite transposed conv as dilate + pad + correlate(flip(W)) -------
    # TODO(synk): for large H/W a stride-phase (sub-pixel) decomposition would
    # avoid the dilation zero-fill entirely; at this size the single collapsed
    # matmul below dominates the win.
    x_dil = jnp.zeros((n, c, hd, wd), jnp.bfloat16).at[:, :, ::s, ::s].set(x_aug)
    x_pad = jnp.pad(
        x_dil,
        ((0, 0), (0, 0),
         (kh - 1 - p, kh - 1 - p + op), (kw - 1 - p, kw - 1 - p + op)),
    )
    x_pad = jnp.transpose(x_pad, (1, 0, 2, 3))             # (C, N, Hp, Wp)

    # im2col: rows ordered tap-major / channel-minor, columns = (N, OH, OW).
    rows = []
    for i in range(kh):
        for j in range(kw):
            rows.append(x_pad[:, :, i:i + oh, j:j + ow].reshape(c, n * oh * ow))
    x_all = jnp.concatenate(rows, axis=0)                  # (K, N*OH*OW) bf16

    k_dim = kh * kw * c
    k_pad = -(-k_dim // 16) * 16                           # 54 -> 64
    if k_pad != k_dim:
        x_all = jnp.pad(x_all, ((0, k_pad - k_dim), (0, 0)))

    # W_all[co, (i*kw+j)*C + ci] = weight[ci, co, kh-1-i, kw-1-j]
    w_all = jnp.transpose(weight[:, :, ::-1, ::-1], (1, 2, 3, 0)).reshape(c_out, k_dim)
    if k_pad != k_dim:
        w_all = jnp.pad(w_all, ((0, 0), (0, k_pad - k_dim)))
    w_all = w_all.astype(jnp.bfloat16)
    bias_2d = bias.reshape(c_out, 1).astype(jnp.float32)

    lanes = n * oh * ow
    n_blk = _num_lane_blocks(lanes)
    lane_blk = lanes // n_blk

    # ---- hot path: one wide lane-dense matmul in Pallas ---------------------
    out_flat = pl.pallas_call(
        _convt_matmul_kernel,
        out_shape=jax.ShapeDtypeStruct((c_out, lanes), jnp.float32),
        grid=(n_blk,),
        in_specs=[
            pl.BlockSpec((k_pad, lane_blk), lambda j: (0, j)),
            pl.BlockSpec((c_out, k_pad), lambda j: (0, 0)),   # VMEM-resident
            pl.BlockSpec((c_out, 1), lambda j: (0, 0)),       # VMEM-resident
        ],
        out_specs=pl.BlockSpec((c_out, lane_blk), lambda j: (0, j)),
        compiler_params=pltpu.CompilerParams(
            dimension_semantics=("parallel",)
        ),
    )(x_all, w_all, bias_2d)

    return jnp.transpose(out_flat.reshape(c_out, n, oh, ow), (1, 0, 2, 3))


if __name__ == "__main__":
    # Module config: ConvTranspose2d(in_channels=4+2, out_channels=8,
    #                                kernel_size=3, stride=2, padding=1,
    #                                output_padding=1)
    N, CIN, H, W = 2, 4, 16, 16
    COUT, K, S, P, OP = 8, 3, 2, 1, 1

    key = jax.random.PRNGKey(0)
    kx, kw_, kb = jax.random.split(key, 3)
    x = jax.random.normal(kx, (N, CIN, H, W), jnp.float32)
    weight = 0.1 * jax.random.normal(kw_, (CIN + 2, COUT, K, K), jnp.float32)
    bias = 0.1 * jax.random.normal(kb, (COUT,), jnp.float32)

    out = coord_conv_transpose(
        x, weight, bias, stride=S, padding=P, output_padding=OP
    )
    out = jax.block_until_ready(out)

    # Independent reference (lhs-dilated conv == ConvTranspose2d) on the same
    # bf16-rounded operands, exact f32 accumulation.
    x_aug = _add_coords(x).astype(jnp.bfloat16).astype(jnp.float32)
    w_ref = jnp.transpose(weight[:, :, ::-1, ::-1], (1, 0, 2, 3))  # (Cout, C, kH, kW)
    w_ref = w_ref.astype(jnp.bfloat16).astype(jnp.float32)
    ref = lax.conv_general_dilated(
        x_aug, w_ref,
        window_strides=(1, 1),
        padding=((K - 1 - P, K - 1 - P + OP), (K - 1 - P, K - 1 - P + OP)),
        lhs_dilation=(S, S),
        dimension_numbers=("NCHW", "OIHW", "NCHW"),
        precision=lax.Precision.HIGHEST,
    ) + bias[None, :, None, None]

    OH = (H - 1) * S - 2 * P + K + OP
    assert out.shape == (N, COUT, OH, OH)
    assert jnp.allclose(out, ref, atol=2e-3, rtol=2e-3), float(
        jnp.max(jnp.abs(out - ref))
    )
    print("KERNEL_OK")
</pallas_src>

<mosaic_0001>
module attributes {stable_mosaic.version = 11 : i64} {
  func.func @_convt_matmul_kernel(%arg0: i32, %arg1: memref<64x2048xbf16, #tpu.memory_space<vmem>>, %arg2: memref<8x64xbf16, #tpu.memory_space<vmem>>, %arg3: memref<8x1xf32, #tpu.memory_space<vmem>>, %arg4: memref<8x2048xf32, #tpu.memory_space<vmem>>) attributes {dimension_semantics = [#tpu.dimension_semantics<parallel>], iteration_bounds = array<i64: 1>, scalar_prefetch = 0 : i64, scratch_operands = 0 : i64, tpu.core_type = #tpu.core_type<tc>, window_params = [{transform_indices = @transform_0, window_bounds = array<i64: 64, 2048>}, {pipeline_mode = #tpu.pipeline_mode<synchronous>, transform_indices = @transform_1, window_bounds = array<i64: 8, 64>}, {pipeline_mode = #tpu.pipeline_mode<synchronous>, transform_indices = @transform_2, window_bounds = array<i64: 8, 1>}, {transform_indices = @transform_3, window_bounds = array<i64: 8, 2048>}]} {
    %c0 = arith.constant 0 : index
    %c0_0 = arith.constant 0 : index
    %0 = vector.load %arg2[%c0, %c0_0] : memref<8x64xbf16, #tpu.memory_space<vmem>>, vector<8x64xbf16>
    %c0_1 = arith.constant 0 : index
    %c0_2 = arith.constant 0 : index
    %1 = vector.load %arg1[%c0_1, %c0_2] : memref<64x2048xbf16, #tpu.memory_space<vmem>>, vector<64x2048xbf16>
    %cst = arith.constant dense<0.000000e+00> : vector<8x2048xf32>
    %2 = tpu.matmul %0, %1, %cst {dimension_numbers = #tpu.dot_dimension_numbers<[1], [0], [0], [1], [0, 0, 1, 1], [], []>} : vector<8x64xbf16>, vector<64x2048xbf16>, vector<8x2048xf32> -> vector<8x2048xf32>
    %c0_3 = arith.constant 0 : index
    %c0_4 = arith.constant 0 : index
    %3 = vector.load %arg3[%c0_3, %c0_4] : memref<8x1xf32, #tpu.memory_space<vmem>>, vector<8x1xf32>
    %4 = vector.broadcast %3 : vector<8x1xf32> to vector<8x2048xf32>
    %5 = arith.addf %2, %4 : vector<8x2048xf32>
    %c0_5 = arith.constant 0 : index
    %c0_6 = arith.constant 0 : index
    %6 = vector.load %arg4[%c0_5, %c0_6] : memref<8x2048xf32, #tpu.memory_space<vmem>>, vector<8x2048xf32>
    tpu.vector_store %arg4[%c0_5, %c0_6], %5 {strides = array<i32>} : memref<8x2048xf32, #tpu.memory_space<vmem>>, vector<8x2048xf32>,
    return
  }
  func.func @transform_0(%arg0: i32) -> (i32, i32) {
    %c0_i32 = arith.constant 0 : i32
    %c0_i32_0 = arith.constant 0 : i32
    return %c0_i32, %arg0 : i32, i32
  }
  func.func @transform_1(%arg0: i32) -> (i32, i32) {
    %c0_i32 = arith.constant 0 : i32
    %c0_i32_0 = arith.constant 0 : i32
    %c0_i32_1 = arith.constant 0 : i32
    return %c0_i32, %c0_i32_0 : i32, i32
  }
  func.func @transform_2(%arg0: i32) -> (i32, i32) {
    %c0_i32 = arith.constant 0 : i32
    %c0_i32_0 = arith.constant 0 : i32
    %c0_i32_1 = arith.constant 0 : i32
    return %c0_i32, %c0_i32_0 : i32, i32
  }
  func.func @transform_3(%arg0: i32) -> (i32, i32) {
    %c0_i32 = arith.constant 0 : i32
    %c0_i32_0 = arith.constant 0 : i32
    return %c0_i32, %arg0 : i32, i32
  }
}

</mosaic_0001>

<llo_original>
// kernel: coord_conv_transpose.1
$region0: #{coord_conv_transpose.1}
  #allocation0 [shape = 'u32[]', space=smem, size = 0x4, offset = 0x4, fixed_abs, tag = 'smem constant byte address 0x4 - core index']
  #allocation1 [shape = 'u32[144,128]{1,0:T(1,128)}', space=vmem, size = 0x12000, scoped, tag = 'internal scratch']
  %s0 = inlined_call_operand.vmem [shape: bf16[64,2048], index: 0, kind: input, shape index: {}]
  %s1 = inlined_call_operand.vmem [shape: bf16[8,64], index: 1, kind: input, shape index: {}]
  %s2 = inlined_call_operand.vmem [shape: f32[8,1], index: 2, kind: input, shape index: {}]
  %s3 = inlined_call_operand.vmem [shape: f32[8,2048], index: 3, kind: output, shape index: {}]
  %s4 = sld [smem:[#allocation0]]
  $region22: #{coord_conv_transpose.1} parent=0
    _
  %s6 = ssub.s32 1, %s4
  %s7 = scalar_select 0, %s6, %s4
  // Predicated region
  $region2: #{coord_conv_transpose.1} parent=0 // pred_check
    _
  $region3: #{coord_conv_transpose.1} parent=0 // pred_check_branch
    %9 = sbr.rel (0) target = $region5
  $region4: #{coord_conv_transpose.1} parent=0 // pred_region
    _
  $region5: #{coord_conv_transpose.1} parent=0 // pred_fallthru
    _
  // Predicated region
  $region6: #{coord_conv_transpose.1} parent=0 // pred_check
    _
  $region7: #{coord_conv_transpose.1} parent=0 // pred_check_branch
    %11 = sbr.rel (0) target = $region9
  $region8: #{coord_conv_transpose.1} parent=0 // pred_region
    _
  $region9: #{coord_conv_transpose.1} parent=0 // pred_fallthru
    _
  // Predicated region
  $region10: #{coord_conv_transpose.1} parent=0 // pred_check
    _
  $region11: #{coord_conv_transpose.1} parent=0 // pred_check_branch
    %13 = sbr.rel (0) target = $region13
  $region12: #{coord_conv_transpose.1} parent=0 // pred_region
    _
  $region13: #{coord_conv_transpose.1} parent=0 // pred_fallthru
    _
  %v15 = vld [vmem:[%s1] sm:$0xf]
  %v16 = vld [vmem:[%s0] sm:$0xff]
  %v17 = vld [vmem:[%s0 + $0x8] sm:$0xff]
  %v18 = vld [vmem:[%s0 + $0x10] sm:$0xff]
  %v19 = vld [vmem:[%s0 + $0x18] sm:$0xff]
  %v20 = vld [vmem:[%s0 + $0x20] sm:$0xff]
  %v21 = vld [vmem:[%s0 + $0x28] sm:$0xff]
  %v22 = vld [vmem:[%s0 + $0x30] sm:$0xff]
  %v23 = vld [vmem:[%s0 + $0x38] sm:$0xff]
  %v24 = vld [vmem:[%s0 + $0x40] sm:$0xff]
  %v25 = vld [vmem:[%s0 + $0x48] sm:$0xff]
  %v26 = vld [vmem:[%s0 + $0x50] sm:$0xff]
  %v27 = vld [vmem:[%s0 + $0x58] sm:$0xff]
  %v28 = vld [vmem:[%s0 + $0x60] sm:$0xff]
  %v29 = vld [vmem:[%s0 + $0x68] sm:$0xff]
  %v30 = vld [vmem:[%s0 + $0x70] sm:$0xff]
  %v31 = vld [vmem:[%s0 + $0x78] sm:$0xff]
  %v32 = vld [vmem:[%s0 + $0x80] sm:$0xff]
  %v33 = vld [vmem:[%s0 + $0x88] sm:$0xff]
  %v34 = vld [vmem:[%s0 + $0x90] sm:$0xff]
  %v35 = vld [vmem:[%s0 + $0x98] sm:$0xff]
  %v36 = vld [vmem:[%s0 + $0xa0] sm:$0xff]
  %v37 = vld [vmem:[%s0 + $0xa8] sm:$0xff]
  %v38 = vld [vmem:[%s0 + $0xb0] sm:$0xff]
  %v39 = vld [vmem:[%s0 + $0xb8] sm:$0xff]
  %v40 = vld [vmem:[%s0 + $0xc0] sm:$0xff]
  %v41 = vld [vmem:[%s0 + $0xc8] sm:$0xff]
  %v42 = vld [vmem:[%s0 + $0xd0] sm:$0xff]
  %v43 = vld [vmem:[%s0 + $0xd8] sm:$0xff]
  %v44 = vld [vmem:[%s0 + $0xe0] sm:$0xff]
  %v45 = vld [vmem:[%s0 + $0xe8] sm:$0xff]
  %v46 = vld [vmem:[%s0 + $0xf0] sm:$0xff]
  %v47 = vld [vmem:[%s0 + $0xf8] sm:$0xff]
  %v48 = vld [vmem:[%s0 + $0x100] sm:$0xff]
  %v49 = vld [vmem:[%s0 + $0x108] sm:$0xff]
  %v50 = vld [vmem:[%s0 + $0x110] sm:$0xff]
  %v51 = vld [vmem:[%s0 + $0x118] sm:$0xff]
  %v52 = vld [vmem:[%s0 + $0x120] sm:$0xff]
  %v53 = vld [vmem:[%s0 + $0x128] sm:$0xff]
  %v54 = vld [vmem:[%s0 + $0x130] sm:$0xff]
  %v55 = vld [vmem:[%s0 + $0x138] sm:$0xff]
  %v56 = vld [vmem:[%s0 + $0x140] sm:$0xff]
  %v57 = vld [vmem:[%s0 + $0x148] sm:$0xff]
  %v58 = vld [vmem:[%s0 + $0x150] sm:$0xff]
  %v59 = vld [vmem:[%s0 + $0x158] sm:$0xff]
  %v60 = vld [vmem:[%s0 + $0x160] sm:$0xff]
  %v61 = vld [vmem:[%s0 + $0x168] sm:$0xff]
  %v62 = vld [vmem:[%s0 + $0x170] sm:$0xff]
  %v63 = vld [vmem:[%s0 + $0x178] sm:$0xff]
  %v64 = vld [vmem:[%s0 + $0x180] sm:$0xff]
  %v65 = vld [vmem:[%s0 + $0x188] sm:$0xff]
  %v66 = vld [vmem:[%s0 + $0x190] sm:$0xff]
  %v67 = vld [vmem:[%s0 + $0x198] sm:$0xff]
  %v68 = vld [vmem:[%s0 + $0x1a0] sm:$0xff]
  %v69 = vld [vmem:[%s0 + $0x1a8] sm:$0xff]
  %v70 = vld [vmem:[%s0 + $0x1b0] sm:$0xff]
  %v71 = vld [vmem:[%s0 + $0x1b8] sm:$0xff]
  %v72 = vld [vmem:[%s0 + $0x1c0] sm:$0xff]
  %v73 = vld [vmem:[%s0 + $0x1c8] sm:$0xff]
  %v74 = vld [vmem:[%s0 + $0x1d0] sm:$0xff]
  %v75 = vld [vmem:[%s0 + $0x1d8] sm:$0xff]
  %v76 = vld [vmem:[%s0 + $0x1e0] sm:$0xff]
  %v77 = vld [vmem:[%s0 + $0x1e8] sm:$0xff]
  %v78 = vld [vmem:[%s0 + $0x1f0] sm:$0xff]
  %v79 = vld [vmem:[%s0 + $0x1f8] sm:$0xff]
  %v80 = vld [vmem:[%s2] sm:$0xff]
  %82 = vset.pattern.permute.xlu0 0
  %83 = vperm.xlu0 %82, %v80
  %v84 = vpop.permute.xlu0 %83
  %v150 = vunpack.c.l.b16 %v16
  %v151 = vunpack.c.h.b16 %v16
  %v152 = vunpack.c.l.b16 %v17
  %v153 = vunpack.c.h.b16 %v17
  %v154 = vunpack.c.l.b16 %v18
  %v155 = vunpack.c.h.b16 %v18
  %v156 = vunpack.c.l.b16 %v19
  %v157 = vunpack.c.h.b16 %v19
  %v158 = vunpack.c.l.b16 %v20
  %v159 = vunpack.c.h.b16 %v20
  %v160 = vunpack.c.l.b16 %v21
  %v161 = vunpack.c.h.b16 %v21
  %v162 = vunpack.c.l.b16 %v22
  %v163 = vunpack.c.h.b16 %v22
  %v164 = vunpack.c.l.b16 %v23
  %v165 = vunpack.c.h.b16 %v23
  %v166 = vunpack.c.l.b16 %v24
  %v167 = vunpack.c.h.b16 %v24
  %v168 = vunpack.c.l.b16 %v25
  %v169 = vunpack.c.h.b16 %v25
  %v170 = vunpack.c.l.b16 %v26
  %v171 = vunpack.c.h.b16 %v26
  %v172 = vunpack.c.l.b16 %v27
  %v173 = vunpack.c.h.b16 %v27
  %v174 = vunpack.c.l.b16 %v28
  %v175 = vunpack.c.h.b16 %v28
  %v176 = vunpack.c.l.b16 %v29
  %v177 = vunpack.c.h.b16 %v29
  %v178 = vunpack.c.l.b16 %v30
  %v179 = vunpack.c.h.b16 %v30
  %v180 = vunpack.c.l.b16 %v31
  %v181 = vunpack.c.h.b16 %v31
  %v182 = vunpack.c.l.b16 %v32
  %v183 = vunpack.c.h.b16 %v32
  %v184 = vunpack.c.l.b16 %v33
  %v185 = vunpack.c.h.b16 %v33
  %v186 = vunpack.c.l.b16 %v34
  %v187 = vunpack.c.h.b16 %v34
  %v188 = vunpack.c.l.b16 %v35
  %v189 = vunpack.c.h.b16 %v35
  %v190 = vunpack.c.l.b16 %v36
  %v191 = vunpack.c.h.b16 %v36
  %v192 = vunpack.c.l.b16 %v37
  %v193 = vunpack.c.h.b16 %v37
  %v194 = vunpack.c.l.b16 %v38
  %v195 = vunpack.c.h.b16 %v38
  %v196 = vunpack.c.l.b16 %v39
  %v197 = vunpack.c.h.b16 %v39
  %v198 = vunpack.c.l.b16 %v40
  %v199 = vunpack.c.h.b16 %v40
  %v200 = vunpack.c.l.b16 %v41
  %v201 = vunpack.c.h.b16 %v41
  %v202 = vunpack.c.l.b16 %v42
  %v203 = vunpack.c.h.b16 %v42
  %v204 = vunpack.c.l.b16 %v43
  %v205 = vunpack.c.h.b16 %v43
  %v206 = vunpack.c.l.b16 %v44
  %v207 = vunpack.c.h.b16 %v44
  %v208 = vunpack.c.l.b16 %v45
  %v209 = vunpack.c.h.b16 %v45
  %v210 = vunpack.c.l.b16 %v46
  %v211 = vunpack.c.h.b16 %v46
  %v212 = vunpack.c.l.b16 %v47
  %v213 = vunpack.c.h.b16 %v47
  %v214 = vunpack.c.l.b16 %v48
  %v215 = vunpack.c.h.b16 %v48
  %v216 = vunpack.c.l.b16 %v49
  %v217 = vunpack.c.h.b16 %v49
  %v218 = vunpack.c.l.b16 %v50
  %v219 = vunpack.c.h.b16 %v50
  %v220 = vunpack.c.l.b16 %v51
  %v221 = vunpack.c.h.b16 %v51
  %v222 = vunpack.c.l.b16 %v52
  %v223 = vunpack.c.h.b16 %v52
  %v224 = vunpack.c.l.b16 %v53
  %v225 = vunpack.c.h.b16 %v53
  %v226 = vunpack.c.l.b16 %v54
  %v227 = vunpack.c.h.b16 %v54
  %v228 = vunpack.c.l.b16 %v55
  %v229 = vunpack.c.h.b16 %v55
  %v230 = vunpack.c.l.b16 %v56
  %v231 = vunpack.c.h.b16 %v56
  %v232 = vunpack.c.l.b16 %v57
  %v233 = vunpack.c.h.b16 %v57
  %v234 = vunpack.c.l.b16 %v58
  %v235 = vunpack.c.h.b16 %v58
  %v236 = vunpack.c.l.b16 %v59
  %v237 = vunpack.c.h.b16 %v59
  %v238 = vunpack.c.l.b16 %v60
  %v239 = vunpack.c.h.b16 %v60
  %v240 = vunpack.c.l.b16 %v61
  %v241 = vunpack.c.h.b16 %v61
  %v242 = vunpack.c.l.b16 %v62
  %v243 = vunpack.c.h.b16 %v62
  %v244 = vunpack.c.l.b16 %v63
  %v245 = vunpack.c.h.b16 %v63
  %v246 = vunpack.c.l.b16 %v64
  %v247 = vunpack.c.h.b16 %v64
  %v248 = vunpack.c.l.b16 %v65
  %v249 = vunpack.c.h.b16 %v65
  %v250 = vunpack.c.l.b16 %v66
  %v251 = vunpack.c.h.b16 %v66
  %v252 = vunpack.c.l.b16 %v67
  %v253 = vunpack.c.h.b16 %v67
  %v254 = vunpack.c.l.b16 %v68
  %v255 = vunpack.c.h.b16 %v68
  %v256 = vunpack.c.l.b16 %v69
  %v257 = vunpack.c.h.b16 %v69
  %v258 = vunpack.c.l.b16 %v70
  %v259 = vunpack.c.h.b16 %v70
  %v260 = vunpack.c.l.b16 %v71
  %v261 = vunpack.c.h.b16 %v71
  %v262 = vunpack.c.l.b16 %v72
  %v263 = vunpack.c.h.b16 %v72
  %v264 = vunpack.c.l.b16 %v73
  %v265 = vunpack.c.h.b16 %v73
  %v266 = vunpack.c.l.b16 %v74
  %v267 = vunpack.c.h.b16 %v74
  %v268 = vunpack.c.l.b16 %v75
  %v269 = vunpack.c.h.b16 %v75
  %v270 = vunpack.c.l.b16 %v76
  %v271 = vunpack.c.h.b16 %v76
  %v272 = vunpack.c.l.b16 %v77
  %v273 = vunpack.c.h.b16 %v77
  %v274 = vunpack.c.l.b16 %v78
  %v275 = vunpack.c.h.b16 %v78
  %v276 = vunpack.c.l.b16 %v79
  %v277 = vunpack.c.h.b16 %v79
  %v278 = vpack.c.b16 %v166, %v150
  %v279 = vpack.c.b16 %v167, %v151
  %v280 = vpack.c.b16 %v168, %v152
  %v281 = vpack.c.b16 %v169, %v153
  %v282 = vpack.c.b16 %v170, %v154
  %v283 = vpack.c.b16 %v171, %v155
  %v284 = vpack.c.b16 %v172, %v156
  %v285 = vpack.c.b16 %v173, %v157
  %v286 = vpack.c.b16 %v174, %v158
  %v287 = vpack.c.b16 %v175, %v159
  %v288 = vpack.c.b16 %v176, %v160
  %v289 = vpack.c.b16 %v177, %v161
  %v290 = vpack.c.b16 %v178, %v162
  %v291 = vpack.c.b16 %v179, %v163
  %v292 = vpack.c.b16 %v180, %v164
  %v293 = vpack.c.b16 %v181, %v165
  %v294 = vpack.c.b16 %v198, %v182
  %v295 = vpack.c.b16 %v199, %v183
  %v296 = vpack.c.b16 %v200, %v184
  %v297 = vpack.c.b16 %v201, %v185
  %v298 = vpack.c.b16 %v202, %v186
  %v299 = vpack.c.b16 %v203, %v187
  %v300 = vpack.c.b16 %v204, %v188
  %v301 = vpack.c.b16 %v205, %v189
  %v302 = vpack.c.b16 %v206, %v190
  %v303 = vpack.c.b16 %v207, %v191
  %v304 = vpack.c.b16 %v208, %v192
  %v305 = vpack.c.b16 %v209, %v193
  %v306 = vpack.c.b16 %v210, %v194
  %v307 = vpack.c.b16 %v211, %v195
  %v308 = vpack.c.b16 %v212, %v196
  %v309 = vpack.c.b16 %v213, %v197
  %v310 = vpack.c.b16 %v230, %v214
  %v311 = vpack.c.b16 %v231, %v215
  %v312 = vpack.c.b16 %v232, %v216
  %v313 = vpack.c.b16 %v233, %v217
  %v314 = vpack.c.b16 %v234, %v218
  %v315 = vpack.c.b16 %v235, %v219
  %v316 = vpack.c.b16 %v236, %v220
  %v317 = vpack.c.b16 %v237, %v221
  %v318 = vpack.c.b16 %v238, %v222
  %v319 = vpack.c.b16 %v239, %v223
  %v320 = vpack.c.b16 %v240, %v224
  %v321 = vpack.c.b16 %v241, %v225
  %v322 = vpack.c.b16 %v242, %v226
  %v323 = vpack.c.b16 %v243, %v227
  %v324 = vpack.c.b16 %v244, %v228
  %v325 = vpack.c.b16 %v245, %v229
  %v326 = vpack.c.b16 %v262, %v246
  %v327 = vpack.c.b16 %v263, %v247
  %v328 = vpack.c.b16 %v264, %v248
  %v329 = vpack.c.b16 %v265, %v249
  %v330 = vpack.c.b16 %v266, %v250
  %v331 = vpack.c.b16 %v267, %v251
  %v332 = vpack.c.b16 %v268, %v252
  %v333 = vpack.c.b16 %v269, %v253
  %v334 = vpack.c.b16 %v270, %v254
  %v335 = vpack.c.b16 %v271, %v255
  %v336 = vpack.c.b16 %v272, %v256
  %v337 = vpack.c.b16 %v273, %v257
  %v338 = vpack.c.b16 %v274, %v258
  %v339 = vpack.c.b16 %v275, %v259
  %v340 = vpack.c.b16 %v276, %v260
  %v341 = vpack.c.b16 %v277, %v261
  %vm406 = vcmask 523264
  %v408 = vsel %vm406, %v15, 0
  %410 = vmatprep.subr.bf16.mxu0 0
  %411 = vmatpush1.bf16.msra.mxu0 0
  %412 = vmatprep.subr.bf16.mxu0 0
  %413 = vmatpush1.bf16.msra.mxu0 0
  %414 = vmatprep.subr.bf16.mxu0 0
  %415 = vmatpush1.bf16.msra.mxu0 0
  %416 = vmatprep.subr.bf16.mxu0 0
  %417 = vmatpush1.bf16.msra.mxu0 0
  %418 = vmatprep.subr.bf16.mxu0 %v327
  %419 = vmatpush1.bf16.msra.mxu0 %v326
  %420 = vmatprep.subr.bf16.mxu0 %v311
  %421 = vmatpush1.bf16.msra.mxu0 %v310
  %422 = vmatprep.subr.bf16.mxu0 %v295
  %423 = vmatpush1.bf16.msra.mxu0 %v294
  %424 = vmatprep.subr.bf16.mxu0 %v279
  %425 = vmatpush1.bf16.msra.mxu0 %v278
  %426 = vmatprep.subr.bf16.mxu0 0
  %427 = vmatpush2.bf16.msra.mxu0 0
  %428 = vmatprep.subr.bf16.mxu0 0
  %429 = vmatpush2.bf16.msra.mxu0 0
  %430 = vmatprep.subr.bf16.mxu0 0
  %431 = vmatpush2.bf16.msra.mxu0 0
  %432 = vmatprep.subr.bf16.mxu0 0
  %433 = vmatpush2.bf16.msra.mxu0 0
  %434 = vmatprep.subr.bf16.mxu0 0
  %435 = vmatpush2.bf16.msra.mxu0 0
  %436 = vmatprep.subr.bf16.mxu0 0
  %437 = vmatpush2.bf16.msra.mxu0 0
  %438 = vmatprep.subr.bf16.mxu0 0
  %439 = vmatpush2.bf16.msra.mxu0 0
  %440 = vmatprep.subr.bf16.mxu0 0
  %441 = vmatpush2.bf16.msra.mxu0 0
  %442 = vmatprep.mubr.bf16.mxu0 0
  %443 = vmatmul.mubr.bf16.gmra.mxu0 %v408
  %v444 = vpop.f32.mrf.mxu0
  %v445 = vadd.f32 %v84, %v444
  %v446 = vpop.f32.mrf.mxu0
  %v447 = vadd.f32 %v84, %v446
  %v448 = vpop.f32.mrf.mxu0
  %v449 = vpop.f32.mrf.mxu0
  %450 = vdwg.mxu0
  %451 = vmatprep.subr.bf16.mxu0 0
  %452 = vmatpush1.bf16.msra.mxu0 0
  %453 = vmatprep.subr.bf16.mxu0 0
  %454 = vmatpush1.bf16.msra.mxu0 0
  %455 = vmatprep.subr.bf16.mxu0 0
  %456 = vmatpush1.bf16.msra.mxu0 0
  %457 = vmatprep.subr.bf16.mxu0 0
  %458 = vmatpush1.bf16.msra.mxu0 0
  %459 = vmatprep.subr.bf16.mxu0 %v329
  %460 = vmatpush1.bf16.msra.mxu0 %v328
  %461 = vmatprep.subr.bf16.mxu0 %v313
  %462 = vmatpush1.bf16.msra.mxu0 %v312
  %463 = vmatprep.subr.bf16.mxu0 %v297
  %464 = vmatpush1.bf16.msra.mxu0 %v296
  %465 = vmatprep.subr.bf16.mxu0 %v281
  %466 = vmatpush1.bf16.msra.mxu0 %v280
  %467 = vmatprep.subr.bf16.mxu0 0
  %468 = vmatpush2.bf16.msra.mxu0 0
  %469 = vmatprep.subr.bf16.mxu0 0
  %470 = vmatpush2.bf16.msra.mxu0 0
  %471 = vmatprep.subr.bf16.mxu0 0
  %472 = vmatpush2.bf16.msra.mxu0 0
  %473 = vmatprep.subr.bf16.mxu0 0
  %474 = vmatpush2.bf16.msra.mxu0 0
  %475 = vmatprep.subr.bf16.mxu0 0
  %476 = vmatpush2.bf16.msra.mxu0 0
  %477 = vmatprep.subr.bf16.mxu0 0
  %478 = vmatpush2.bf16.msra.mxu0 0
  %479 = vmatprep.subr.bf16.mxu0 0
  %480 = vmatpush2.bf16.msra.mxu0 0
  %481 = vmatprep.subr.bf16.mxu0 0
  %482 = vmatpush2.bf16.msra.mxu0 0
  %483 = vmatprep.mubr.bf16.mxu0 0
  %484 = vmatmul.mubr.bf16.gmra.mxu0 %v408
  %v485 = vpop.f32.mrf.mxu0
  %v486 = vadd.f32 %v84, %v485
  %v487 = vpop.f32.mrf.mxu0
  %v488 = vadd.f32 %v84, %v487
  %v489 = vpop.f32.mrf.mxu0
  %v490 = vpop.f32.mrf.mxu0
  %491 = vdwg.mxu0
  %492 = vmatprep.subr.bf16.mxu0 0
  %493 = vmatpush1.bf16.msra.mxu0 0
  %494 = vmatprep.subr.bf16.mxu0 0
  %495 = vmatpush1.bf16.msra.mxu0 0
  %496 = vmatprep.subr.bf16.mxu0 0
  %497 = vmatpush1.bf16.msra.mxu0 0
  %498 = vmatprep.subr.bf16.mxu0 0
  %499 = vmatpush1.bf16.msra.mxu0 0
  %500 = vmatprep.subr.bf16.mxu0 %v331
  %501 = vmatpush1.bf16.msra.mxu0 %v330
  %502 = vmatprep.subr.bf16.mxu0 %v315
  %503 = vmatpush1.bf16.msra.mxu0 %v314
  %504 = vmatprep.subr.bf16.mxu0 %v299
  %505 = vmatpush1.bf16.msra.mxu0 %v298
  %506 = vmatprep.subr.bf16.mxu0 %v283
  %507 = vmatpush1.bf16.msra.mxu0 %v282
  %508 = vmatprep.subr.bf16.mxu0 0
  %509 = vmatpush2.bf16.msra.mxu0 0
  %510 = vmatprep.subr.bf16.mxu0 0
  %511 = vmatpush2.bf16.msra.mxu0 0
  %512 = vmatprep.subr.bf16.mxu0 0
  %513 = vmatpush2.bf16.msra.mxu0 0
  %514 = vmatprep.subr.bf16.mxu0 0
  %515 = vmatpush2.bf16.msra.mxu0 0
  %516 = vmatprep.subr.bf16.mxu0 0
  %517 = vmatpush2.bf16.msra.mxu0 0
  %518 = vmatprep.subr.bf16.mxu0 0
  %519 = vmatpush2.bf16.msra.mxu0 0
  %520 = vmatprep.subr.bf16.mxu0 0
  %521 = vmatpush2.bf16.msra.mxu0 0
  %522 = vmatprep.subr.bf16.mxu0 0
  %523 = vmatpush2.bf16.msra.mxu0 0
  %524 = vmatprep.mubr.bf16.mxu0 0
  %525 = vmatmul.mubr.bf16.gmra.mxu0 %v408
  %v526 = vpop.f32.mrf.mxu0
  %v527 = vadd.f32 %v84, %v526
  %v528 = vpop.f32.mrf.mxu0
  %v529 = vadd.f32 %v84, %v528
  %v530 = vpop.f32.mrf.mxu0
  %v531 = vpop.f32.mrf.mxu0
  %532 = vdwg.mxu0
  %533 = vmatprep.subr.bf16.mxu0 0
  %534 = vmatpush1.bf16.msra.mxu0 0
  %535 = vmatprep.subr.bf16.mxu0 0
  %536 = vmatpush1.bf16.msra.mxu0 0
  %537 = vmatprep.subr.bf16.mxu0 0
  %538 = vmatpush1.bf16.msra.mxu0 0
  %539 = vmatprep.subr.bf16.mxu0 0
  %540 = vmatpush1.bf16.msra.mxu0 0
  %541 = vmatprep.subr.bf16.mxu0 %v333
  %542 = vmatpush1.bf16.msra.mxu0 %v332
  %543 = vmatprep.subr.bf16.mxu0 %v317
  %544 = vmatpush1.bf16.msra.mxu0 %v316
  %545 = vmatprep.subr.bf16.mxu0 %v301
  %546 = vmatpush1.bf16.msra.mxu0 %v300
  %547 = vmatprep.subr.bf16.mxu0 %v285
  %548 = vmatpush1.bf16.msra.mxu0 %v284
  %549 = vmatprep.subr.bf16.mxu0 0
  %550 = vmatpush2.bf16.msra.mxu0 0
  %551 = vmatprep.subr.bf16.mxu0 0
  %552 = vmatpush2.bf16.msra.mxu0 0
  %553 = vmatprep.subr.bf16.mxu0 0
  %554 = vmatpush2.bf16.msra.mxu0 0
  %555 = vmatprep.subr.bf16.mxu0 0
  %556 = vmatpush2.bf16.msra.mxu0 0
  %557 = vmatprep.subr.bf16.mxu0 0
  %558 = vmatpush2.bf16.msra.mxu0 0
  %559 = vmatprep.subr.bf16.mxu0 0
  %560 = vmatpush2.bf16.msra.mxu0 0
  %561 = vmatprep.subr.bf16.mxu0 0
  %562 = vmatpush2.bf16.msra.mxu0 0
  %563 = vmatprep.subr.bf16.mxu0 0
  %564 = vmatpush2.bf16.msra.mxu0 0
  %565 = vmatprep.mubr.bf16.mxu0 0
  %566 = vmatmul.mubr.bf16.gmra.mxu0 %v408
  %v567 = vpop.f32.mrf.mxu0
  %v568 = vadd.f32 %v84, %v567
  %v569 = vpop.f32.mrf.mxu0
  %v570 = vadd.f32 %v84, %v569
  %v571 = vpop.f32.mrf.mxu0
  %v572 = vpop.f32.mrf.mxu0
  %573 = vdwg.mxu0
  %574 = vmatprep.subr.bf16.mxu0 0
  %575 = vmatpush1.bf16.msra.mxu0 0
  %576 = vmatprep.subr.bf16.mxu0 0
  %577 = vmatpush1.bf16.msra.mxu0 0
  %578 = vmatprep.subr.bf16.mxu0 0
  %579 = vmatpush1.bf16.msra.mxu0 0
  %580 = vmatprep.subr.bf16.mxu0 0
  %581 = vmatpush1.bf16.msra.mxu0 0
  %582 = vmatprep.subr.bf16.mxu0 %v335
  %583 = vmatpush1.bf16.msra.mxu0 %v334
  %584 = vmatprep.subr.bf16.mxu0 %v319
  %585 = vmatpush1.bf16.msra.mxu0 %v318
  %586 = vmatprep.subr.bf16.mxu0 %v303
  %587 = vmatpush1.bf16.msra.mxu0 %v302
  %588 = vmatprep.subr.bf16.mxu0 %v287
  %589 = vmatpush1.bf16.msra.mxu0 %v286
  %590 = vmatprep.subr.bf16.mxu0 0
  %591 = vmatpush2.bf16.msra.mxu0 0
  %592 = vmatprep.subr.bf16.mxu0 0
  %593 = vmatpush2.bf16.msra.mxu0 0
  %594 = vmatprep.subr.bf16.mxu0 0
  %595 = vmatpush2.bf16.msra.mxu0 0
  %596 = vmatprep.subr.bf16.mxu0 0
  %597 = vmatpush2.bf16.msra.mxu0 0
  %598 = vmatprep.subr.bf16.mxu0 0
  %599 = vmatpush2.bf16.msra.mxu0 0
  %600 = vmatprep.subr.bf16.mxu0 0
  %601 = vmatpush2.bf16.msra.mxu0 0
  %602 = vmatprep.subr.bf16.mxu0 0
  %603 = vmatpush2.bf16.msra.mxu0 0
  %604 = vmatprep.subr.bf16.mxu0 0
  %605 = vmatpush2.bf16.msra.mxu0 0
  %606 = vmatprep.mubr.bf16.mxu0 0
  %607 = vmatmul.mubr.bf16.gmra.mxu0 %v408
  %v608 = vpop.f32.mrf.mxu0
  %v609 = vadd.f32 %v84, %v608
  %v610 = vpop.f32.mrf.mxu0
  %v611 = vadd.f32 %v84, %v610
  %v612 = vpop.f32.mrf.mxu0
  %v613 = vpop.f32.mrf.mxu0
  %614 = vdwg.mxu0
  %615 = vmatprep.subr.bf16.mxu0 0
  %616 = vmatpush1.bf16.msra.mxu0 0
  %617 = vmatprep.subr.bf16.mxu0 0
  %618 = vmatpush1.bf16.msra.mxu0 0
  %619 = vmatprep.subr.bf16.mxu0 0
  %620 = vmatpush1.bf16.msra.mxu0 0
  %621 = vmatprep.subr.bf16.mxu0 0
  %622 = vmatpush1.bf16.msra.mxu0 0
  %623 = vmatprep.subr.bf16.mxu0 %v337
  %624 = vmatpush1.bf16.msra.mxu0 %v336
  %625 = vmatprep.subr.bf16.mxu0 %v321
  %626 = vmatpush1.bf16.msra.mxu0 %v320
  %627 = vmatprep.subr.bf16.mxu0 %v305
  %628 = vmatpush1.bf16.msra.mxu0 %v304
  %629 = vmatprep.subr.bf16.mxu0 %v289
  %630 = vmatpush1.bf16.msra.mxu0 %v288
  %631 = vmatprep.subr.bf16.mxu0 0
  %632 = vmatpush2.bf16.msra.mxu0 0
  %633 = vmatprep.subr.bf16.mxu0 0
  %634 = vmatpush2.bf16.msra.mxu0 0
  %635 = vmatprep.subr.bf16.mxu0 0
  %636 = vmatpush2.bf16.msra.mxu0 0
  %637 = vmatprep.subr.bf16.mxu0 0
  %638 = vmatpush2.bf16.msra.mxu0 0
  %639 = vmatprep.subr.bf16.mxu0 0
  %640 = vmatpush2.bf16.msra.mxu0 0
  %641 = vmatprep.subr.bf16.mxu0 0
  %642 = vmatpush2.bf16.msra.mxu0 0
  %643 = vmatprep.subr.bf16.mxu0 0
  %644 = vmatpush2.bf16.msra.mxu0 0
  %645 = vmatprep.subr.bf16.mxu0 0
  %646 = vmatpush2.bf16.msra.mxu0 0
  %647 = vmatprep.mubr.bf16.mxu0 0
  %648 = vmatmul.mubr.bf16.gmra.mxu0 %v408
  %v649 = vpop.f32.mrf.mxu0
  %v650 = vadd.f32 %v84, %v649
  %v651 = vpop.f32.mrf.mxu0
  %v652 = vadd.f32 %v84, %v651
  %v653 = vpop.f32.mrf.mxu0
  %v654 = vpop.f32.mrf.mxu0
  %655 = vdwg.mxu0
  %656 = vmatprep.subr.bf16.mxu0 0
  %657 = vmatpush1.bf16.msra.mxu0 0
  %658 = vmatprep.subr.bf16.mxu0 0
  %659 = vmatpush1.bf16.msra.mxu0 0
  %660 = vmatprep.subr.bf16.mxu0 0
  %661 = vmatpush1.bf16.msra.mxu0 0
  %662 = vmatprep.subr.bf16.mxu0 0
  %663 = vmatpush1.bf16.msra.mxu0 0
  %664 = vmatprep.subr.bf16.mxu0 %v339
  %665 = vmatpush1.bf16.msra.mxu0 %v338
  %666 = vmatprep.subr.bf16.mxu0 %v323
  %667 = vmatpush1.bf16.msra.mxu0 %v322
  %668 = vmatprep.subr.bf16.mxu0 %v307
  %669 = vmatpush1.bf16.msra.mxu0 %v306
  %670 = vmatprep.subr.bf16.mxu0 %v291
  %671 = vmatpush1.bf16.msra.mxu0 %v290
  %672 = vmatprep.subr.bf16.mxu0 0
  %673 = vmatpush2.bf16.msra.mxu0 0
  %674 = vmatprep.subr.bf16.mxu0 0
  %675 = vmatpush2.bf16.msra.mxu0 0
  %676 = vmatprep.subr.bf16.mxu0 0
  %677 = vmatpush2.bf16.msra.mxu0 0
  %678 = vmatprep.subr.bf16.mxu0 0
  %679 = vmatpush2.bf16.msra.mxu0 0
  %680 = vmatprep.subr.bf16.mxu0 0
  %681 = vmatpush2.bf16.msra.mxu0 0
  %682 = vmatprep.subr.bf16.mxu0 0
  %683 = vmatpush2.bf16.msra.mxu0 0
  %684 = vmatprep.subr.bf16.mxu0 0
  %685 = vmatpush2.bf16.msra.mxu0 0
  %686 = vmatprep.subr.bf16.mxu0 0
  %687 = vmatpush2.bf16.msra.mxu0 0
  %688 = vmatprep.mubr.bf16.mxu0 0
  %689 = vmatmul.mubr.bf16.gmra.mxu0 %v408
  %v690 = vpop.f32.mrf.mxu0
  %v691 = vadd.f32 %v84, %v690
  %v692 = vpop.f32.mrf.mxu0
  %v693 = vadd.f32 %v84, %v692
  %v694 = vpop.f32.mrf.mxu0
  %v695 = vpop.f32.mrf.mxu0
  %696 = vdwg.mxu0
  %697 = vmatprep.subr.bf16.mxu0 0
  %698 = vmatpush1.bf16.msra.mxu0 0
  %699 = vmatprep.subr.bf16.mxu0 0
  %700 = vmatpush1.bf16.msra.mxu0 0
  %701 = vmatprep.subr.bf16.mxu0 0
  %702 = vmatpush1.bf16.msra.mxu0 0
  %703 = vmatprep.subr.bf16.mxu0 0
  %704 = vmatpush1.bf16.msra.mxu0 0
  %705 = vmatprep.subr.bf16.mxu0 %v341
  %706 = vmatpush1.bf16.msra.mxu0 %v340
  %707 = vmatprep.subr.bf16.mxu0 %v325
  %708 = vmatpush1.bf16.msra.mxu0 %v324
  %709 = vmatprep.subr.bf16.mxu0 %v309
  %710 = vmatpush1.bf16.msra.mxu0 %v308
  %711 = vmatprep.subr.bf16.mxu0 %v293
  %712 = vmatpush1.bf16.msra.mxu0 %v292
  %713 = vmatprep.subr.bf16.mxu0 0
  %714 = vmatpush2.bf16.msra.mxu0 0
  %715 = vmatprep.subr.bf16.mxu0 0
  %716 = vmatpush2.bf16.msra.mxu0 0
  %717 = vmatprep.subr.bf16.mxu0 0
  %718 = vmatpush2.bf16.msra.mxu0 0
  %719 = vmatprep.subr.bf16.mxu0 0
  %720 = vmatpush2.bf16.msra.mxu0 0
  %721 = vmatprep.subr.bf16.mxu0 0
  %722 = vmatpush2.bf16.msra.mxu0 0
  %723 = vmatprep.subr.bf16.mxu0 0
  %724 = vmatpush2.bf16.msra.mxu0 0
  %725 = vmatprep.subr.bf16.mxu0 0
  %726 = vmatpush2.bf16.msra.mxu0 0
  %727 = vmatprep.subr.bf16.mxu0 0
  %728 = vmatpush2.bf16.msra.mxu0 0
  %729 = vmatprep.mubr.bf16.mxu0 0
  %730 = vmatmul.mubr.bf16.gmra.mxu0 %v408
  %v731 = vpop.f32.mrf.mxu0
  %v732 = vadd.f32 %v84, %v731
  %v733 = vpop.f32.mrf.mxu0
  %v734 = vadd.f32 %v84, %v733
  %v735 = vpop.f32.mrf.mxu0
  %v736 = vpop.f32.mrf.mxu0
  %737 = vdwg.mxu0
  %738 = vst [vmem:[%s3] sm:$0xff] %v445
  %739 = vst [vmem:[%s3 + $0x8] sm:$0xff] %v447
  %740 = vst [vmem:[%s3 + $0x10] sm:$0xff] %v486
  %741 = vst [vmem:[%s3 + $0x18] sm:$0xff] %v488
  %742 = vst [vmem:[%s3 + $0x20] sm:$0xff] %v527
  %743 = vst [vmem:[%s3 + $0x28] sm:$0xff] %v529
  %744 = vst [vmem:[%s3 + $0x30] sm:$0xff] %v568
  %745 = vst [vmem:[%s3 + $0x38] sm:$0xff] %v570
  %746 = vst [vmem:[%s3 + $0x40] sm:$0xff] %v609
  %747 = vst [vmem:[%s3 + $0x48] sm:$0xff] %v611
  %748 = vst [vmem:[%s3 + $0x50] sm:$0xff] %v650
  %749 = vst [vmem:[%s3 + $0x58] sm:$0xff] %v652
  %750 = vst [vmem:[%s3 + $0x60] sm:$0xff] %v691
  %751 = vst [vmem:[%s3 + $0x68] sm:$0xff] %v693
  %752 = vst [vmem:[%s3 + $0x70] sm:$0xff] %v732
  %753 = vst [vmem:[%s3 + $0x78] sm:$0xff] %v734
  // Predicated region
  $region14: #{coord_conv_transpose.1} parent=0 // pred_check
    _
  $region15: #{coord_conv_transpose.1} parent=0 // pred_check_branch
    %755 = sbr.rel (0) target = $region17
  $region16: #{coord_conv_transpose.1} parent=0 // pred_region
    _
  $region17: #{coord_conv_transpose.1} parent=0 // pred_fallthru
    _
  // Predicated region
  $region18: #{coord_conv_transpose.1} parent=0 // pred_check
    _
  $region19: #{coord_conv_transpose.1} parent=0 // pred_check_branch
    %757 = sbr.rel (0) target = $region21
  $region20: #{coord_conv_transpose.1} parent=0 // pred_region
    _
  $region21: #{coord_conv_transpose.1} parent=0 // pred_fallthru
    _

</llo_original>
